<compile_context>
chip_gen: v7x
topology: tpu7x:2x2x1
jax: 0.10.0
libtpu: 0.0.40
codegen_flags: <defaults>
</compile_context>

<pallas_src>
import functools

import jax
import jax.numpy as jnp
from jax.experimental import pallas as pl
from jax.experimental.pallas import tpu as pltpu


LANE = 128        # vreg lane width — hidden/output dims pad to a multiple of this
SUBLANE = 16      # batch padding granularity (bf16 sublane pack = 16 rows)
TILE_M = 512      # batch tile for the gridded path
NO_GRID_MAX = 512 # batches up to this size run with no grid at all


def _round_up(x: int, m: int) -> int:
    return (x + m - 1) // m * m


# ----------------------------- Pallas kernel ---------------------------------
def _fused_mlp_kernel(x_ref, w1_ref, b1_ref, w_ref, b_ref, o_ref, *, num_rest: int):
    """Entire MLP on one activation tile.

    x_ref : (tile_m, f_pad)      bf16 input activations (batch-padded only)
    w1_ref: (f_pad, PAD)         bf16 first-layer weight
    b1_ref: (1, PAD)             f32  first-layer bias
    w_ref : (L-1, PAD, PAD)      bf16 stacked remaining weights (in, out)
    b_ref : (L-1, 1, PAD)        f32  stacked remaining biases
    o_ref : (tile_m, PAD)        f32  final-layer output (lane-padded)
    """
    x = x_ref[...]                                           # bf16
    # Layer 1: bf16 x bf16 -> f32 accumulate on the MXU, bias+ReLU in f32.
    y = jnp.dot(x, w1_ref[...], preferred_element_type=jnp.float32)
    y = jnp.maximum(y + b1_ref[...], 0.0)
    # Remaining layers (linear_2, hidden units, linear_3, linear_4).
    for layer in range(num_rest):                            # static loop
        z = jnp.dot(y.astype(jnp.bfloat16), w_ref[layer],
                    preferred_element_type=jnp.float32)
        z = z + b_ref[layer]
        if layer < num_rest - 1:                             # no ReLU on linear_4
            z = jnp.maximum(z, 0.0)
        y = z
    o_ref[...] = y.astype(o_ref.dtype)


def fused_mlp(x_pad, w1, b1, w_rest, b_rest):
    """Single pallas_call running the whole padded MLP."""
    m_pad, f_pad = x_pad.shape
    num_rest, pad, _ = w_rest.shape
    kernel = functools.partial(_fused_mlp_kernel, num_rest=num_rest)
    out_shape = jax.ShapeDtypeStruct((m_pad, pad), jnp.float32)

    if m_pad <= NO_GRID_MAX:
        # One VMEM-resident block; no grid (a 1-point grid only adds overhead).
        return pl.pallas_call(
            kernel,
            out_shape=out_shape,
            in_specs=[pl.BlockSpec(memory_space=pltpu.MemorySpace.VMEM)] * 5,
            out_specs=pl.BlockSpec(memory_space=pltpu.MemorySpace.VMEM),
        )(x_pad, w1, b1, w_rest, b_rest)

    # Large batch: stream (TILE_M, f_pad) activation tiles over a parallel grid
    # axis (>= 2 steps by construction -> both v7x TensorCores get work);
    # weights/biases stay VMEM-resident (index_map pinned to block 0).
    assert m_pad % TILE_M == 0
    return pl.pallas_call(
        kernel,
        out_shape=out_shape,
        grid=(m_pad // TILE_M,),
        in_specs=[
            pl.BlockSpec((TILE_M, f_pad), lambda i: (i, 0)),
            pl.BlockSpec((f_pad, pad), lambda i: (0, 0)),
            pl.BlockSpec((1, pad), lambda i: (0, 0)),
            pl.BlockSpec((num_rest, pad, pad), lambda i: (0, 0, 0)),
            pl.BlockSpec((num_rest, 1, pad), lambda i: (0, 0, 0)),
        ],
        out_specs=pl.BlockSpec((TILE_M, pad), lambda i: (i, 0)),
        compiler_params=pltpu.CompilerParams(
            dimension_semantics=("parallel",),
        ),
    )(x_pad, w1, b1, w_rest, b_rest)


# --------------------------- parameter construction --------------------------
def _init_linear(key, fan_in, fan_out, dtype=jnp.float32):
    """Kaiming-uniform-ish init matching nn.Linear shapes (stored as (in, out))."""
    kw, kb = jax.random.split(key)
    bound = 1.0 / (fan_in ** 0.5)
    w = jax.random.uniform(kw, (fan_in, fan_out), dtype, -bound, bound)
    b = jax.random.uniform(kb, (fan_out,), dtype, -bound, bound)
    return w, b


def init_deep_mlp(key, hp):
    n_stack = hp["Stack"]
    keys = jax.random.split(key, 4 + n_stack)
    p = {}
    p["linear_1"] = _init_linear(keys[0], hp["num_features"], hp["HD-1"])
    p["linear_2"] = _init_linear(keys[1], hp["HD-1"], hp["HD-1"])
    p["hidden"] = [
        _init_linear(keys[2 + i], hp["HD-1"], hp["HD-1"]) for i in range(n_stack)
    ]
    p["linear_3"] = _init_linear(keys[2 + n_stack], hp["HD-1"], hp["HD-2"])
    p["linear_4"] = _init_linear(keys[3 + n_stack], hp["HD-2"], hp["OutDim"])
    return p


def pack_deep_mlp_params(p):
    """Pack once at init (NOT in the per-call jitted path).

    linear_1 is kept separate so the streamed input only carries the real
    feature width; the remaining layers (all <= 128 wide here) are zero-padded
    to (PAD, PAD) and stacked.  Padded weight rows/cols and bias lanes are
    zero, so padded activation lanes stay exactly zero through every layer
    (relu(0) == 0) and the final [:batch, :OutDim] slice equals the un-padded
    network.  Weights are bf16 (MXU operands); biases stay f32 (VPU adds).
    """
    rest = [p["linear_2"], *p["hidden"], p["linear_3"], p["linear_4"]]
    f_in = p["linear_1"][0].shape[0]
    out_dim = p["linear_4"][0].shape[1]
    dims = [p["linear_1"][0].shape[1]] + [w.shape[1] for w, _ in rest]
    pad = _round_up(max(dims), LANE)
    f_pad = _round_up(f_in, 8)

    w1 = jnp.zeros((f_pad, pad), jnp.float32)
    b1 = jnp.zeros((1, pad), jnp.float32)
    w1 = w1.at[:f_in, : p["linear_1"][0].shape[1]].set(p["linear_1"][0])
    b1 = b1.at[0, : p["linear_1"][1].shape[0]].set(p["linear_1"][1])

    w_rest = jnp.zeros((len(rest), pad, pad), jnp.float32)
    b_rest = jnp.zeros((len(rest), 1, pad), jnp.float32)
    for i, (w, b) in enumerate(rest):
        k, n = w.shape
        w_rest = w_rest.at[i, :k, :n].set(w)
        b_rest = b_rest.at[i, 0, :n].set(b)

    packed = {
        "w1": w1.astype(jnp.bfloat16),
        "b1": b1,
        "w_rest": w_rest.astype(jnp.bfloat16),
        "b_rest": b_rest,
    }
    return packed, f_in, f_pad, out_dim


# ------------------------------ forward pass ---------------------------------
def deep_mlp_forward(w1, b1, w_rest, b_rest, features, *, out_dim: int):
    """Fused Pallas forward pass.  features: (batch, num_features)."""
    m, f = features.shape
    f_pad = w1.shape[0]
    m_pad = _round_up(max(m, SUBLANE), SUBLANE)
    if m_pad > NO_GRID_MAX:
        m_pad = _round_up(m_pad, TILE_M)
    # Batch padding + bf16 cast only — the feature dim stays narrow in HBM.
    x_pad = jnp.zeros((m_pad, f_pad), jnp.bfloat16).at[:m, :f].set(
        features.astype(jnp.bfloat16)
    )
    out_pad = fused_mlp(x_pad, w1, b1, w_rest, b_rest)
    return out_pad[:m, :out_dim]


# pure-JAX reference for a sanity check (full f32)
def deep_mlp_ref(p, features):
    relu = lambda z: jnp.maximum(z, 0.0)
    x = relu(features @ p["linear_1"][0] + p["linear_1"][1])
    x = relu(x @ p["linear_2"][0] + p["linear_2"][1])
    for w, b in p["hidden"]:
        x = relu(x @ w + b)
    x = relu(x @ p["linear_3"][0] + p["linear_3"][1])
    x = x @ p["linear_4"][0] + p["linear_4"][1]
    return x


if __name__ == "__main__":
    hparams = {
        "Stack": 2,
        "num_features": 32,
        "HD-1": 64,
        "HD-2": 32,
        "OutDim": 8,
        "Dropout": 0.1,  # identity at inference
    }

    key = jax.random.PRNGKey(0)
    k_param, k_small, k_large = jax.random.split(key, 3)
    params = init_deep_mlp(k_param, hparams)

    # Pack once (hoisted out of the per-call path), reuse across forwards.
    packed, f_in, f_pad, out_dim = pack_deep_mlp_params(params)
    fwd = jax.jit(functools.partial(deep_mlp_forward, out_dim=out_dim))

    # Small batch -> no-grid path.
    batch = 4
    features = jax.random.normal(k_small, (batch, f_in), jnp.float32)
    out = fwd(packed["w1"], packed["b1"], packed["w_rest"], packed["b_rest"],
              features)
    out = jax.block_until_ready(out)
    ref = deep_mlp_ref(params, features)
    assert out.shape == (batch, out_dim)
    # bf16 MXU operands -> loosened tolerance vs. the full-f32 reference.
    assert jnp.allclose(out, ref, atol=5e-2, rtol=5e-2), (
        float(jnp.max(jnp.abs(out - ref))))

    # Larger batch -> gridded path (>= 2 grid steps, parallel batch axis).
    batch_l = 600
    features_l = jax.random.normal(k_large, (batch_l, f_in), jnp.float32)
    out_l = fwd(packed["w1"], packed["b1"], packed["w_rest"], packed["b_rest"],
                features_l)
    out_l = jax.block_until_ready(out_l)
    ref_l = deep_mlp_ref(params, features_l)
    assert out_l.shape == (batch_l, out_dim)
    assert jnp.allclose(out_l, ref_l, atol=5e-2, rtol=5e-2), (
        float(jnp.max(jnp.abs(out_l - ref_l))))

    print("KERNEL_OK")
</pallas_src>

<mosaic_0001>
module attributes {stable_mosaic.version = 11 : i64} {
  func.func @_fused_mlp_kernel(%arg0: memref<16x32xbf16, #tpu.memory_space<vmem>>, %arg1: memref<32x128xbf16, #tpu.memory_space<vmem>>, %arg2: memref<1x128xf32, #tpu.memory_space<vmem>>, %arg3: memref<5x128x128xbf16, #tpu.memory_space<vmem>>, %arg4: memref<5x1x128xf32, #tpu.memory_space<vmem>>, %arg5: memref<16x128xf32, #tpu.memory_space<vmem>>) attributes {dimension_semantics = [], scalar_prefetch = 0 : i64, scratch_operands = 0 : i64, tpu.core_type = #tpu.core_type<tc>} {
    %c0 = arith.constant 0 : index
    %c0_0 = arith.constant 0 : index
    %0 = vector.load %arg0[%c0, %c0_0] : memref<16x32xbf16, #tpu.memory_space<vmem>>, vector<16x32xbf16>
    %c0_1 = arith.constant 0 : index
    %c0_2 = arith.constant 0 : index
    %1 = vector.load %arg1[%c0_1, %c0_2] : memref<32x128xbf16, #tpu.memory_space<vmem>>, vector<32x128xbf16>
    %cst = arith.constant dense<0.000000e+00> : vector<16x128xf32>
    %2 = tpu.matmul %0, %1, %cst {dimension_numbers = #tpu.dot_dimension_numbers<[1], [0], [0], [1], [0, 0, 1, 1], [], []>} : vector<16x32xbf16>, vector<32x128xbf16>, vector<16x128xf32> -> vector<16x128xf32>
    %c0_3 = arith.constant 0 : index
    %c0_4 = arith.constant 0 : index
    %3 = vector.load %arg2[%c0_3, %c0_4] : memref<1x128xf32, #tpu.memory_space<vmem>>, vector<1x128xf32>
    %4 = vector.broadcast %3 : vector<1x128xf32> to vector<16x128xf32>
    %5 = arith.addf %2, %4 : vector<16x128xf32>
    %cst_5 = arith.constant 0.000000e+00 : f32
    %6 = vector.broadcast %cst_5 : f32 to vector<16x128xf32>
    %7 = arith.maximumf %5, %6 : vector<16x128xf32>
    %8 = arith.truncf %7 : vector<16x128xf32> to vector<16x128xbf16>
    %c0_6 = arith.constant 0 : index
    %c0_7 = arith.constant 0 : index
    %c0_8 = arith.constant 0 : index
    %9 = vector.load %arg3[%c0_6, %c0_7, %c0_8] : memref<5x128x128xbf16, #tpu.memory_space<vmem>>, vector<1x128x128xbf16>
    %10 = vector.shape_cast %9 : vector<1x128x128xbf16> to vector<128x128xbf16>
    %cst_9 = arith.constant dense<0.000000e+00> : vector<16x128xf32>
    %11 = tpu.matmul %8, %10, %cst_9 {dimension_numbers = #tpu.dot_dimension_numbers<[1], [0], [0], [1], [0, 0, 1, 1], [], []>} : vector<16x128xbf16>, vector<128x128xbf16>, vector<16x128xf32> -> vector<16x128xf32>
    %c0_10 = arith.constant 0 : index
    %c0_11 = arith.constant 0 : index
    %c0_12 = arith.constant 0 : index
    %12 = vector.load %arg4[%c0_10, %c0_11, %c0_12] : memref<5x1x128xf32, #tpu.memory_space<vmem>>, vector<1x1x128xf32>
    %13 = vector.shape_cast %12 : vector<1x1x128xf32> to vector<1x128xf32>
    %14 = vector.broadcast %13 : vector<1x128xf32> to vector<16x128xf32>
    %15 = arith.addf %11, %14 : vector<16x128xf32>
    %cst_13 = arith.constant 0.000000e+00 : f32
    %16 = vector.broadcast %cst_13 : f32 to vector<16x128xf32>
    %17 = arith.maximumf %15, %16 : vector<16x128xf32>
    %18 = arith.truncf %17 : vector<16x128xf32> to vector<16x128xbf16>
    %c1 = arith.constant 1 : index
    %c0_14 = arith.constant 0 : index
    %c0_15 = arith.constant 0 : index
    %19 = vector.load %arg3[%c1, %c0_14, %c0_15] : memref<5x128x128xbf16, #tpu.memory_space<vmem>>, vector<1x128x128xbf16>
    %20 = vector.shape_cast %19 : vector<1x128x128xbf16> to vector<128x128xbf16>
    %cst_16 = arith.constant dense<0.000000e+00> : vector<16x128xf32>
    %21 = tpu.matmul %18, %20, %cst_16 {dimension_numbers = #tpu.dot_dimension_numbers<[1], [0], [0], [1], [0, 0, 1, 1], [], []>} : vector<16x128xbf16>, vector<128x128xbf16>, vector<16x128xf32> -> vector<16x128xf32>
    %c1_17 = arith.constant 1 : index
    %c0_18 = arith.constant 0 : index
    %c0_19 = arith.constant 0 : index
    %22 = vector.load %arg4[%c1_17, %c0_18, %c0_19] : memref<5x1x128xf32, #tpu.memory_space<vmem>>, vector<1x1x128xf32>
    %23 = vector.shape_cast %22 : vector<1x1x128xf32> to vector<1x128xf32>
    %24 = vector.broadcast %23 : vector<1x128xf32> to vector<16x128xf32>
    %25 = arith.addf %21, %24 : vector<16x128xf32>
    %cst_20 = arith.constant 0.000000e+00 : f32
    %26 = vector.broadcast %cst_20 : f32 to vector<16x128xf32>
    %27 = arith.maximumf %25, %26 : vector<16x128xf32>
    %28 = arith.truncf %27 : vector<16x128xf32> to vector<16x128xbf16>
    %c2 = arith.constant 2 : index
    %c0_21 = arith.constant 0 : index
    %c0_22 = arith.constant 0 : index
    %29 = vector.load %arg3[%c2, %c0_21, %c0_22] : memref<5x128x128xbf16, #tpu.memory_space<vmem>>, vector<1x128x128xbf16>
    %30 = vector.shape_cast %29 : vector<1x128x128xbf16> to vector<128x128xbf16>
    %cst_23 = arith.constant dense<0.000000e+00> : vector<16x128xf32>
    %31 = tpu.matmul %28, %30, %cst_23 {dimension_numbers = #tpu.dot_dimension_numbers<[1], [0], [0], [1], [0, 0, 1, 1], [], []>} : vector<16x128xbf16>, vector<128x128xbf16>, vector<16x128xf32> -> vector<16x128xf32>
    %c2_24 = arith.constant 2 : index
    %c0_25 = arith.constant 0 : index
    %c0_26 = arith.constant 0 : index
    %32 = vector.load %arg4[%c2_24, %c0_25, %c0_26] : memref<5x1x128xf32, #tpu.memory_space<vmem>>, vector<1x1x128xf32>
    %33 = vector.shape_cast %32 : vector<1x1x128xf32> to vector<1x128xf32>
    %34 = vector.broadcast %33 : vector<1x128xf32> to vector<16x128xf32>
    %35 = arith.addf %31, %34 : vector<16x128xf32>
    %cst_27 = arith.constant 0.000000e+00 : f32
    %36 = vector.broadcast %cst_27 : f32 to vector<16x128xf32>
    %37 = arith.maximumf %35, %36 : vector<16x128xf32>
    %38 = arith.truncf %37 : vector<16x128xf32> to vector<16x128xbf16>
    %c3 = arith.constant 3 : index
    %c0_28 = arith.constant 0 : index
    %c0_29 = arith.constant 0 : index
    %39 = vector.load %arg3[%c3, %c0_28, %c0_29] : memref<5x128x128xbf16, #tpu.memory_space<vmem>>, vector<1x128x128xbf16>
    %40 = vector.shape_cast %39 : vector<1x128x128xbf16> to vector<128x128xbf16>
    %cst_30 = arith.constant dense<0.000000e+00> : vector<16x128xf32>
    %41 = tpu.matmul %38, %40, %cst_30 {dimension_numbers = #tpu.dot_dimension_numbers<[1], [0], [0], [1], [0, 0, 1, 1], [], []>} : vector<16x128xbf16>, vector<128x128xbf16>, vector<16x128xf32> -> vector<16x128xf32>
    %c3_31 = arith.constant 3 : index
    %c0_32 = arith.constant 0 : index
    %c0_33 = arith.constant 0 : index
    %42 = vector.load %arg4[%c3_31, %c0_32, %c0_33] : memref<5x1x128xf32, #tpu.memory_space<vmem>>, vector<1x1x128xf32>
    %43 = vector.shape_cast %42 : vector<1x1x128xf32> to vector<1x128xf32>
    %44 = vector.broadcast %43 : vector<1x128xf32> to vector<16x128xf32>
    %45 = arith.addf %41, %44 : vector<16x128xf32>
    %cst_34 = arith.constant 0.000000e+00 : f32
    %46 = vector.broadcast %cst_34 : f32 to vector<16x128xf32>
    %47 = arith.maximumf %45, %46 : vector<16x128xf32>
    %48 = arith.truncf %47 : vector<16x128xf32> to vector<16x128xbf16>
    %c4 = arith.constant 4 : index
    %c0_35 = arith.constant 0 : index
    %c0_36 = arith.constant 0 : index
    %49 = vector.load %arg3[%c4, %c0_35, %c0_36] : memref<5x128x128xbf16, #tpu.memory_space<vmem>>, vector<1x128x128xbf16>
    %50 = vector.shape_cast %49 : vector<1x128x128xbf16> to vector<128x128xbf16>
    %cst_37 = arith.constant dense<0.000000e+00> : vector<16x128xf32>
    %51 = tpu.matmul %48, %50, %cst_37 {dimension_numbers = #tpu.dot_dimension_numbers<[1], [0], [0], [1], [0, 0, 1, 1], [], []>} : vector<16x128xbf16>, vector<128x128xbf16>, vector<16x128xf32> -> vector<16x128xf32>
    %c4_38 = arith.constant 4 : index
    %c0_39 = arith.constant 0 : index
    %c0_40 = arith.constant 0 : index
    %52 = vector.load %arg4[%c4_38, %c0_39, %c0_40] : memref<5x1x128xf32, #tpu.memory_space<vmem>>, vector<1x1x128xf32>
    %53 = vector.shape_cast %52 : vector<1x1x128xf32> to vector<1x128xf32>
    %54 = vector.broadcast %53 : vector<1x128xf32> to vector<16x128xf32>
    %55 = arith.addf %51, %54 : vector<16x128xf32>
    %c0_41 = arith.constant 0 : index
    %c0_42 = arith.constant 0 : index
    %56 = vector.load %arg5[%c0_41, %c0_42] : memref<16x128xf32, #tpu.memory_space<vmem>>, vector<16x128xf32>
    tpu.vector_store %arg5[%c0_41, %c0_42], %55 {strides = array<i32>} : memref<16x128xf32, #tpu.memory_space<vmem>>, vector<16x128xf32>,
    return
  }
}

</mosaic_0001>

<llo_original>
// kernel: deep_mlp_forward.1
$region0: #{deep_mlp_forward.1}
  #allocation0 [shape = 'u32[]', space=smem, size = 0x4, offset = 0x4, fixed_abs, tag = 'smem constant byte address 0x4 - core index']
  #allocation1 [shape = 'u32[144,128]{1,0:T(1,128)}', space=vmem, size = 0x12000, scoped, tag = 'internal scratch']
  %s0 = inlined_call_operand.vmem [shape: bf16[16,32], index: 0, kind: input, shape index: {}]
  %s1 = inlined_call_operand.vmem [shape: bf16[32,128], index: 1, kind: input, shape index: {}]
  %s2 = inlined_call_operand.vmem [shape: f32[1,128], index: 2, kind: input, shape index: {}]
  %s3 = inlined_call_operand.hbm [shape: bf16[5,128,128], index: 3, kind: input, shape index: {}]
  %s4 = inlined_call_operand.vmem [shape: f32[5,1,128], index: 4, kind: input, shape index: {}]
  %s5 = inlined_call_operand.vmem [shape: f32[16,128], index: 5, kind: output, shape index: {}]
  %s6 = sld [smem:[#allocation0]]
  $region34: #{deep_mlp_forward.1} parent=0
    _
  %s8 = ssub.s32 1, %s6
  %s9 = scalar_select 0, %s8, %s6
  $region1: #{deep_mlp_forward.1} parent=0
    #allocation2 [shape = 'u8[163840]{0}', space=vmem, size = 0x28000, scoped, tag = 'input window, operand 3, single buffered']
    #allocation3 [shape = 's32[1]{0}', space=sflag, size = 0x4, scoped, tag = 'scoped memory for deep_mlp_forward.1']
    %10 = vsyncpa [#allocation3], 0
    // Predicated region
    $region2: #{deep_mlp_forward.1} parent=1 // pred_check
      _
    $region3: #{deep_mlp_forward.1} parent=1 // pred_check_branch
      %12 = sbr.rel (0) target = $region5
    $region4: #{deep_mlp_forward.1} parent=1 // pred_region
      _
    $region5: #{deep_mlp_forward.1} parent=1 // pred_fallthru
      _
    // Predicated region
    $region6: #{deep_mlp_forward.1} parent=1 // pred_check
      _
    $region7: #{deep_mlp_forward.1} parent=1 // pred_check_branch
      %14 = sbr.rel (0) target = $region9
    $region8: #{deep_mlp_forward.1} parent=1 // pred_region
      _
    $region9: #{deep_mlp_forward.1} parent=1 // pred_fallthru
      _
    // Predicated region
    $region10: #{deep_mlp_forward.1} parent=1 // pred_check
      _
    $region11: #{deep_mlp_forward.1} parent=1 // pred_check_branch
      %16 = sbr.rel (0) target = $region13
    $region12: #{deep_mlp_forward.1} parent=1 // pred_region
      _
    $region13: #{deep_mlp_forward.1} parent=1 // pred_fallthru
      _
    // Predicated region
    $region14: #{deep_mlp_forward.1} parent=1 // pred_check
      _
    $region15: #{deep_mlp_forward.1} parent=1 // pred_check_branch
      %18 = sbr.rel (0) target = $region17
    $region16: #{deep_mlp_forward.1} parent=1 // pred_region
      %s20 = ssub.s32 5120, 5120
      %21 = vsyncadd [#allocation3], %s20
      %s22 = sshll.u32 [#allocation2], 4
      %s23 = int_to_ptr.vmem [resolvable:$true] %s22
      %28 = dma.hbm_to_vmem [thread:$0]  %s3, 5120, %s23, [#allocation3], 64, 64, 4
    $region17: #{deep_mlp_forward.1} parent=1 // pred_fallthru
      _
    // Predicated region
    $region18: #{deep_mlp_forward.1} parent=1 // pred_check
      _
    $region19: #{deep_mlp_forward.1} parent=1 // pred_check_branch
      %30 = sbr.rel (0) target = $region21
    $region20: #{deep_mlp_forward.1} parent=1 // pred_region
      _
    $region21: #{deep_mlp_forward.1} parent=1 // pred_fallthru
      _
    // Predicated region
    $region22: #{deep_mlp_forward.1} parent=1 // pred_check
      _
    $region23: #{deep_mlp_forward.1} parent=1 // pred_check_branch
      %32 = sbr.rel (0) target = $region25
    $region24: #{deep_mlp_forward.1} parent=1 // pred_region
      %33 = dma.done [#allocation3], 5120
    $region25: #{deep_mlp_forward.1} parent=1 // pred_fallthru
      _
    %v35 = vld [vmem:[%s0] sm:$0xf]
    %v36 = vld [vmem:[%s0 + $0x4] sm:$0xf]
    %v37 = vld [vmem:[%s1] sm:$0xf]
    %v38 = vld [vmem:[%s1 + $0x4] sm:$0xf]
    %v39 = vld [vmem:[%s1 + $0x8] sm:$0xf]
    %v40 = vld [vmem:[%s1 + $0xc] sm:$0xf]
    %v41 = vld [vmem:[%s2] sm:$0x1]
    %v43 = vlaneseq
    %v44 = vshrl.u32 %v43, 7
    %v45 = vsub.s32 0, %v44
    %v46 = vrot.slane %v41, %v45
    %v50 = vunpack.c.l.b16 %v35
    %v51 = vunpack.c.l.b16 %v36
    %v52 = vpack.c.b16 %v51, %v50
    %v57 = vunpack.c.l.b16 %v37
    %v58 = vunpack.c.l.b16 %v38
    %v59 = vunpack.c.l.b16 %v39
    %v60 = vunpack.c.l.b16 %v40
    %v61 = vpack.c.b16 %v58, %v57
    %v62 = vpack.c.b16 %v60, %v59
    %vm65 = vcmask 261120
    %v67 = vsel %vm65, %v52, 0
    %69 = vmatprep.subr.bf16.mxu0 0
    %70 = vmatpush1.bf16.msra.mxu0 %v61
    %71 = vmatprep.subr.bf16.mxu0 0
    %72 = vmatpush1.bf16.msra.mxu0 %v62
    %73 = vmatprep.subr.bf16.mxu0 0
    %74 = vmatpush1.bf16.msra.mxu0 0
    %75 = vmatprep.subr.bf16.mxu0 0
    %76 = vmatpush1.bf16.msra.mxu0 0
    %77 = vmatprep.subr.bf16.mxu0 0
    %78 = vmatpush1.bf16.msra.mxu0 0
    %79 = vmatprep.subr.bf16.mxu0 0
    %80 = vmatpush1.bf16.msra.mxu0 0
    %81 = vmatprep.subr.bf16.mxu0 0
    %82 = vmatpush1.bf16.msra.mxu0 0
    %83 = vmatprep.subr.bf16.mxu0 0
    %84 = vmatpush1.bf16.msra.mxu0 0
    %85 = vmatprep.subr.bf16.mxu0 0
    %86 = vmatpush1.bf16.msra.mxu0 0
    %87 = vmatprep.subr.bf16.mxu0 0
    %88 = vmatpush1.bf16.msra.mxu0 0
    %89 = vmatprep.subr.bf16.mxu0 0
    %90 = vmatpush1.bf16.msra.mxu0 0
    %91 = vmatprep.subr.bf16.mxu0 0
    %92 = vmatpush1.bf16.msra.mxu0 0
    %93 = vmatprep.subr.bf16.mxu0 0
    %94 = vmatpush1.bf16.msra.mxu0 0
    %95 = vmatprep.subr.bf16.mxu0 0
    %96 = vmatpush1.bf16.msra.mxu0 0
    %97 = vmatprep.subr.bf16.mxu0 0
    %98 = vmatpush1.bf16.msra.mxu0 0
    %99 = vmatprep.subr.bf16.mxu0 0
    %100 = vmatpush1.bf16.msra.mxu0 0
    %101 = vmatprep.mubr.bf16.mxu0 0
    %102 = vmatmul.mubr.bf16.gmra.mrb[0].mxu0 %v67
    %v103 = vpop.f32.mrb[0].mxu0
    %v104 = vadd.f32 %v46, %v103
    %v105 = vpop.f32.mrb[0].mxu0
    %v106 = vpop.f32.mrb[0].mxu0
    %v107 = vadd.f32 %v46, %v106
    %v108 = vpop.f32.mrb[0].mxu0
    %109 = vdwg.mxu0
    %v110 = vmax.f32 %v104, 0.0
    %v111 = vmax.f32 %v107, 0.0
    %v112 = vpack.c.bf16 %v111, %v110
    %v113 = vld [vmem:[#allocation2] sm:$0xf]
    %v114 = vld [vmem:[#allocation2 + $0x4] sm:$0xf]
    %v115 = vld [vmem:[#allocation2 + $0x8] sm:$0xf]
    %v116 = vld [vmem:[#allocation2 + $0xc] sm:$0xf]
    %v117 = vld [vmem:[#allocation2 + $0x10] sm:$0xf]
    %v118 = vld [vmem:[#allocation2 + $0x14] sm:$0xf]
    %v119 = vld [vmem:[#allocation2 + $0x18] sm:$0xf]
    %v120 = vld [vmem:[#allocation2 + $0x1c] sm:$0xf]
    %v121 = vld [vmem:[#allocation2 + $0x20] sm:$0xf]
    %v122 = vld [vmem:[#allocation2 + $0x24] sm:$0xf]
    %v123 = vld [vmem:[#allocation2 + $0x28] sm:$0xf]
    %v124 = vld [vmem:[#allocation2 + $0x2c] sm:$0xf]
    %v125 = vld [vmem:[#allocation2 + $0x30] sm:$0xf]
    %v126 = vld [vmem:[#allocation2 + $0x34] sm:$0xf]
    %v127 = vld [vmem:[#allocation2 + $0x38] sm:$0xf]
    %v128 = vld [vmem:[#allocation2 + $0x3c] sm:$0xf]
    %v129 = vld [vmem:[%s4] sm:$0x1]
    %v131 = vlaneseq
    %v132 = vshrl.u32 %v131, 7
    %v133 = vsub.s32 0, %v132
    %v134 = vrot.slane %v129, %v133
    %v152 = vunpack.c.l.b16 %v113
    %v153 = vunpack.c.l.b16 %v114
    %v154 = vunpack.c.l.b16 %v115
    %v155 = vunpack.c.l.b16 %v116
    %v156 = vunpack.c.l.b16 %v117
    %v157 = vunpack.c.l.b16 %v118
    %v158 = vunpack.c.l.b16 %v119
    %v159 = vunpack.c.l.b16 %v120
    %v160 = vunpack.c.l.b16 %v121
    %v161 = vunpack.c.l.b16 %v122
    %v162 = vunpack.c.l.b16 %v123
    %v163 = vunpack.c.l.b16 %v124
    %v164 = vunpack.c.l.b16 %v125
    %v165 = vunpack.c.l.b16 %v126
    %v166 = vunpack.c.l.b16 %v127
    %v167 = vunpack.c.l.b16 %v128
    %v168 = vpack.c.b16 %v153, %v152
    %v169 = vpack.c.b16 %v155, %v154
    %v170 = vpack.c.b16 %v157, %v156
    %v171 = vpack.c.b16 %v159, %v158
    %v172 = vpack.c.b16 %v161, %v160
    %v173 = vpack.c.b16 %v163, %v162
    %v174 = vpack.c.b16 %v165, %v164
    %v175 = vpack.c.b16 %v167, %v166
    %184 = vmatprep.subr.bf16.mxu0 0
    %185 = vmatpush1.bf16.msra.mxu0 %v168
    %186 = vmatprep.subr.bf16.mxu0 0
    %187 = vmatpush1.bf16.msra.mxu0 %v169
    %188 = vmatprep.subr.bf16.mxu0 0
    %189 = vmatpush1.bf16.msra.mxu0 %v170
    %190 = vmatprep.subr.bf16.mxu0 0
    %191 = vmatpush1.bf16.msra.mxu0 %v171
    %192 = vmatprep.subr.bf16.mxu0 0
    %193 = vmatpush1.bf16.msra.mxu0 %v172
    %194 = vmatprep.subr.bf16.mxu0 0
    %195 = vmatpush1.bf16.msra.mxu0 %v173
    %196 = vmatprep.subr.bf16.mxu0 0
    %197 = vmatpush1.bf16.msra.mxu0 %v174
    %198 = vmatprep.subr.bf16.mxu0 0
    %199 = vmatpush1.bf16.msra.mxu0 %v175
    %200 = vmatprep.subr.bf16.mxu0 0
    %201 = vmatpush1.bf16.msra.mxu0 0
    %202 = vmatprep.subr.bf16.mxu0 0
    %203 = vmatpush1.bf16.msra.mxu0 0
    %204 = vmatprep.subr.bf16.mxu0 0
    %205 = vmatpush1.bf16.msra.mxu0 0
    %206 = vmatprep.subr.bf16.mxu0 0
    %207 = vmatpush1.bf16.msra.mxu0 0
    %208 = vmatprep.subr.bf16.mxu0 0
    %209 = vmatpush1.bf16.msra.mxu0 0
    %210 = vmatprep.subr.bf16.mxu0 0
    %211 = vmatpush1.bf16.msra.mxu0 0
    %212 = vmatprep.subr.bf16.mxu0 0
    %213 = vmatpush1.bf16.msra.mxu0 0
    %214 = vmatprep.subr.bf16.mxu0 0
    %215 = vmatpush1.bf16.msra.mxu0 0
    %216 = vmatprep.mubr.bf16.mxu0 0
    %217 = vmatmul.mubr.bf16.gmra.mrb[0].mxu0 %v112
    %v218 = vpop.f32.mrb[0].mxu0
    %v219 = vadd.f32 %v134, %v218
    %v220 = vpop.f32.mrb[0].mxu0
    %v221 = vpop.f32.mrb[0].mxu0
    %v222 = vadd.f32 %v134, %v221
    %v223 = vpop.f32.mrb[0].mxu0
    %224 = vdwg.mxu0
    %v225 = vmax.f32 %v219, 0.0
    %v226 = vmax.f32 %v222, 0.0
    %v227 = vpack.c.bf16 %v226, %v225
    %s228 = scalar_lea.vmem [#allocation2], 64
    %v229 = vld [vmem:[%s228] sm:$0xf]
    %v230 = vld [vmem:[%s228 + $0x4] sm:$0xf]
    %v231 = vld [vmem:[%s228 + $0x8] sm:$0xf]
    %v232 = vld [vmem:[%s228 + $0xc] sm:$0xf]
    %v233 = vld [vmem:[%s228 + $0x10] sm:$0xf]
    %v234 = vld [vmem:[%s228 + $0x14] sm:$0xf]
    %v235 = vld [vmem:[%s228 + $0x18] sm:$0xf]
    %v236 = vld [vmem:[%s228 + $0x1c] sm:$0xf]
    %v237 = vld [vmem:[%s228 + $0x20] sm:$0xf]
    %v238 = vld [vmem:[%s228 + $0x24] sm:$0xf]
    %v239 = vld [vmem:[%s228 + $0x28] sm:$0xf]
    %v240 = vld [vmem:[%s228 + $0x2c] sm:$0xf]
    %v241 = vld [vmem:[%s228 + $0x30] sm:$0xf]
    %v242 = vld [vmem:[%s228 + $0x34] sm:$0xf]
    %v243 = vld [vmem:[%s228 + $0x38] sm:$0xf]
    %v244 = vld [vmem:[%s228 + $0x3c] sm:$0xf]
    %s245 = scalar_lea.vmem %s4, 1
    %v246 = vld [vmem:[%s245] sm:$0x1]
    %v248 = vlaneseq
    %v249 = vshrl.u32 %v248, 7
    %v250 = vsub.s32 0, %v249
    %v251 = vrot.slane %v246, %v250
    %v269 = vunpack.c.l.b16 %v229
    %v270 = vunpack.c.l.b16 %v230
    %v271 = vunpack.c.l.b16 %v231
    %v272 = vunpack.c.l.b16 %v232
    %v273 = vunpack.c.l.b16 %v233
    %v274 = vunpack.c.l.b16 %v234
    %v275 = vunpack.c.l.b16 %v235
    %v276 = vunpack.c.l.b16 %v236
    %v277 = vunpack.c.l.b16 %v237
    %v278 = vunpack.c.l.b16 %v238
    %v279 = vunpack.c.l.b16 %v239
    %v280 = vunpack.c.l.b16 %v240
    %v281 = vunpack.c.l.b16 %v241
    %v282 = vunpack.c.l.b16 %v242
    %v283 = vunpack.c.l.b16 %v243
    %v284 = vunpack.c.l.b16 %v244
    %v285 = vpack.c.b16 %v270, %v269
    %v286 = vpack.c.b16 %v272, %v271
    %v287 = vpack.c.b16 %v274, %v273
    %v288 = vpack.c.b16 %v276, %v275
    %v289 = vpack.c.b16 %v278, %v277
    %v290 = vpack.c.b16 %v280, %v279
    %v291 = vpack.c.b16 %v282, %v281
    %v292 = vpack.c.b16 %v284, %v283
    %301 = vmatprep.subr.bf16.mxu0 0
    %302 = vmatpush1.bf16.msra.mxu0 %v285
    %303 = vmatprep.subr.bf16.mxu0 0
    %304 = vmatpush1.bf16.msra.mxu0 %v286
    %305 = vmatprep.subr.bf16.mxu0 0
    %306 = vmatpush1.bf16.msra.mxu0 %v287
    %307 = vmatprep.subr.bf16.mxu0 0
    %308 = vmatpush1.bf16.msra.mxu0 %v288
    %309 = vmatprep.subr.bf16.mxu0 0
    %310 = vmatpush1.bf16.msra.mxu0 %v289
    %311 = vmatprep.subr.bf16.mxu0 0
    %312 = vmatpush1.bf16.msra.mxu0 %v290
    %313 = vmatprep.subr.bf16.mxu0 0
    %314 = vmatpush1.bf16.msra.mxu0 %v291
    %315 = vmatprep.subr.bf16.mxu0 0
    %316 = vmatpush1.bf16.msra.mxu0 %v292
    %317 = vmatprep.subr.bf16.mxu0 0
    %318 = vmatpush1.bf16.msra.mxu0 0
    %319 = vmatprep.subr.bf16.mxu0 0
    %320 = vmatpush1.bf16.msra.mxu0 0
    %321 = vmatprep.subr.bf16.mxu0 0
    %322 = vmatpush1.bf16.msra.mxu0 0
    %323 = vmatprep.subr.bf16.mxu0 0
    %324 = vmatpush1.bf16.msra.mxu0 0
    %325 = vmatprep.subr.bf16.mxu0 0
    %326 = vmatpush1.bf16.msra.mxu0 0
    %327 = vmatprep.subr.bf16.mxu0 0
    %328 = vmatpush1.bf16.msra.mxu0 0
    %329 = vmatprep.subr.bf16.mxu0 0
    %330 = vmatpush1.bf16.msra.mxu0 0
    %331 = vmatprep.subr.bf16.mxu0 0
    %332 = vmatpush1.bf16.msra.mxu0 0
    %333 = vmatprep.mubr.bf16.mxu0 0
    %334 = vmatmul.mubr.bf16.gmra.mrb[0].mxu0 %v227
    %v335 = vpop.f32.mrb[0].mxu0
    %v336 = vadd.f32 %v251, %v335
    %v337 = vpop.f32.mrb[0].mxu0
    %v338 = vpop.f32.mrb[0].mxu0
    %v339 = vadd.f32 %v251, %v338
    %v340 = vpop.f32.mrb[0].mxu0
    %341 = vdwg.mxu0
    %v342 = vmax.f32 %v336, 0.0
    %v343 = vmax.f32 %v339, 0.0
    %v344 = vpack.c.bf16 %v343, %v342
    %s345 = scalar_lea.vmem [#allocation2], 128
    %v346 = vld [vmem:[%s345] sm:$0xf]
    %v347 = vld [vmem:[%s345 + $0x4] sm:$0xf]
    %v348 = vld [vmem:[%s345 + $0x8] sm:$0xf]
    %v349 = vld [vmem:[%s345 + $0xc] sm:$0xf]
    %v350 = vld [vmem:[%s345 + $0x10] sm:$0xf]
    %v351 = vld [vmem:[%s345 + $0x14] sm:$0xf]
    %v352 = vld [vmem:[%s345 + $0x18] sm:$0xf]
    %v353 = vld [vmem:[%s345 + $0x1c] sm:$0xf]
    %v354 = vld [vmem:[%s345 + $0x20] sm:$0xf]
    %v355 = vld [vmem:[%s345 + $0x24] sm:$0xf]
    %v356 = vld [vmem:[%s345 + $0x28] sm:$0xf]
    %v357 = vld [vmem:[%s345 + $0x2c] sm:$0xf]
    %v358 = vld [vmem:[%s345 + $0x30] sm:$0xf]
    %v359 = vld [vmem:[%s345 + $0x34] sm:$0xf]
    %v360 = vld [vmem:[%s345 + $0x38] sm:$0xf]
    %v361 = vld [vmem:[%s345 + $0x3c] sm:$0xf]
    %s362 = scalar_lea.vmem %s4, 2
    %v363 = vld [vmem:[%s362] sm:$0x1]
    %v365 = vlaneseq
    %v366 = vshrl.u32 %v365, 7
    %v367 = vsub.s32 0, %v366
    %v368 = vrot.slane %v363, %v367
    %v386 = vunpack.c.l.b16 %v346
    %v387 = vunpack.c.l.b16 %v347
    %v388 = vunpack.c.l.b16 %v348
    %v389 = vunpack.c.l.b16 %v349
    %v390 = vunpack.c.l.b16 %v350
    %v391 = vunpack.c.l.b16 %v351
    %v392 = vunpack.c.l.b16 %v352
    %v393 = vunpack.c.l.b16 %v353
    %v394 = vunpack.c.l.b16 %v354
    %v395 = vunpack.c.l.b16 %v355
    %v396 = vunpack.c.l.b16 %v356
    %v397 = vunpack.c.l.b16 %v357
    %v398 = vunpack.c.l.b16 %v358
    %v399 = vunpack.c.l.b16 %v359
    %v400 = vunpack.c.l.b16 %v360
    %v401 = vunpack.c.l.b16 %v361
    %v402 = vpack.c.b16 %v387, %v386
    %v403 = vpack.c.b16 %v389, %v388
    %v404 = vpack.c.b16 %v391, %v390
    %v405 = vpack.c.b16 %v393, %v392
    %v406 = vpack.c.b16 %v395, %v394
    %v407 = vpack.c.b16 %v397, %v396
    %v408 = vpack.c.b16 %v399, %v398
    %v409 = vpack.c.b16 %v401, %v400
    %418 = vmatprep.subr.bf16.mxu0 0
    %419 = vmatpush1.bf16.msra.mxu0 %v402
    %420 = vmatprep.subr.bf16.mxu0 0
    %421 = vmatpush1.bf16.msra.mxu0 %v403
    %422 = vmatprep.subr.bf16.mxu0 0
    %423 = vmatpush1.bf16.msra.mxu0 %v404
    %424 = vmatprep.subr.bf16.mxu0 0
    %425 = vmatpush1.bf16.msra.mxu0 %v405
    %426 = vmatprep.subr.bf16.mxu0 0
    %427 = vmatpush1.bf16.msra.mxu0 %v406
    %428 = vmatprep.subr.bf16.mxu0 0
    %429 = vmatpush1.bf16.msra.mxu0 %v407
    %430 = vmatprep.subr.bf16.mxu0 0
    %431 = vmatpush1.bf16.msra.mxu0 %v408
    %432 = vmatprep.subr.bf16.mxu0 0
    %433 = vmatpush1.bf16.msra.mxu0 %v409
    %434 = vmatprep.subr.bf16.mxu0 0
    %435 = vmatpush1.bf16.msra.mxu0 0
    %436 = vmatprep.subr.bf16.mxu0 0
    %437 = vmatpush1.bf16.msra.mxu0 0
    %438 = vmatprep.subr.bf16.mxu0 0
    %439 = vmatpush1.bf16.msra.mxu0 0
    %440 = vmatprep.subr.bf16.mxu0 0
    %441 = vmatpush1.bf16.msra.mxu0 0
    %442 = vmatprep.subr.bf16.mxu0 0
    %443 = vmatpush1.bf16.msra.mxu0 0
    %444 = vmatprep.subr.bf16.mxu0 0
    %445 = vmatpush1.bf16.msra.mxu0 0
    %446 = vmatprep.subr.bf16.mxu0 0
    %447 = vmatpush1.bf16.msra.mxu0 0
    %448 = vmatprep.subr.bf16.mxu0 0
    %449 = vmatpush1.bf16.msra.mxu0 0
    %450 = vmatprep.mubr.bf16.mxu0 0
    %451 = vmatmul.mubr.bf16.gmra.mrb[0].mxu0 %v344
    %v452 = vpop.f32.mrb[0].mxu0
    %v453 = vadd.f32 %v368, %v452
    %v454 = vpop.f32.mrb[0].mxu0
    %v455 = vpop.f32.mrb[0].mxu0
    %v456 = vadd.f32 %v368, %v455
    %v457 = vpop.f32.mrb[0].mxu0
    %458 = vdwg.mxu0
    %v459 = vmax.f32 %v453, 0.0
    %v460 = vmax.f32 %v456, 0.0
    %v461 = vpack.c.bf16 %v460, %v459
    %s462 = scalar_lea.vmem [#allocation2], 192
    %v463 = vld [vmem:[%s462] sm:$0xf]
    %v464 = vld [vmem:[%s462 + $0x4] sm:$0xf]
    %v465 = vld [vmem:[%s462 + $0x8] sm:$0xf]
    %v466 = vld [vmem:[%s462 + $0xc] sm:$0xf]
    %v467 = vld [vmem:[%s462 + $0x10] sm:$0xf]
    %v468 = vld [vmem:[%s462 + $0x14] sm:$0xf]
    %v469 = vld [vmem:[%s462 + $0x18] sm:$0xf]
    %v470 = vld [vmem:[%s462 + $0x1c] sm:$0xf]
    %v471 = vld [vmem:[%s462 + $0x20] sm:$0xf]
    %v472 = vld [vmem:[%s462 + $0x24] sm:$0xf]
    %v473 = vld [vmem:[%s462 + $0x28] sm:$0xf]
    %v474 = vld [vmem:[%s462 + $0x2c] sm:$0xf]
    %v475 = vld [vmem:[%s462 + $0x30] sm:$0xf]
    %v476 = vld [vmem:[%s462 + $0x34] sm:$0xf]
    %v477 = vld [vmem:[%s462 + $0x38] sm:$0xf]
    %v478 = vld [vmem:[%s462 + $0x3c] sm:$0xf]
    %s479 = scalar_lea.vmem %s4, 3
    %v480 = vld [vmem:[%s479] sm:$0x1]
    %v482 = vlaneseq
    %v483 = vshrl.u32 %v482, 7
    %v484 = vsub.s32 0, %v483
    %v485 = vrot.slane %v480, %v484
    %v503 = vunpack.c.l.b16 %v463
    %v504 = vunpack.c.l.b16 %v464
    %v505 = vunpack.c.l.b16 %v465
    %v506 = vunpack.c.l.b16 %v466
    %v507 = vunpack.c.l.b16 %v467
    %v508 = vunpack.c.l.b16 %v468
    %v509 = vunpack.c.l.b16 %v469
    %v510 = vunpack.c.l.b16 %v470
    %v511 = vunpack.c.l.b16 %v471
    %v512 = vunpack.c.l.b16 %v472
    %v513 = vunpack.c.l.b16 %v473
    %v514 = vunpack.c.l.b16 %v474
    %v515 = vunpack.c.l.b16 %v475
    %v516 = vunpack.c.l.b16 %v476
    %v517 = vunpack.c.l.b16 %v477
    %v518 = vunpack.c.l.b16 %v478
    %v519 = vpack.c.b16 %v504, %v503
    %v520 = vpack.c.b16 %v506, %v505
    %v521 = vpack.c.b16 %v508, %v507
    %v522 = vpack.c.b16 %v510, %v509
    %v523 = vpack.c.b16 %v512, %v511
    %v524 = vpack.c.b16 %v514, %v513
    %v525 = vpack.c.b16 %v516, %v515
    %v526 = vpack.c.b16 %v518, %v517
    %535 = vmatprep.subr.bf16.mxu0 0
    %536 = vmatpush1.bf16.msra.mxu0 %v519
    %537 = vmatprep.subr.bf16.mxu0 0
    %538 = vmatpush1.bf16.msra.mxu0 %v520
    %539 = vmatprep.subr.bf16.mxu0 0
    %540 = vmatpush1.bf16.msra.mxu0 %v521
    %541 = vmatprep.subr.bf16.mxu0 0
    %542 = vmatpush1.bf16.msra.mxu0 %v522
    %543 = vmatprep.subr.bf16.mxu0 0
    %544 = vmatpush1.bf16.msra.mxu0 %v523
    %545 = vmatprep.subr.bf16.mxu0 0
    %546 = vmatpush1.bf16.msra.mxu0 %v524
    %547 = vmatprep.subr.bf16.mxu0 0
    %548 = vmatpush1.bf16.msra.mxu0 %v525
    %549 = vmatprep.subr.bf16.mxu0 0
    %550 = vmatpush1.bf16.msra.mxu0 %v526
    %551 = vmatprep.subr.bf16.mxu0 0
    %552 = vmatpush1.bf16.msra.mxu0 0
    %553 = vmatprep.subr.bf16.mxu0 0
    %554 = vmatpush1.bf16.msra.mxu0 0
    %555 = vmatprep.subr.bf16.mxu0 0
    %556 = vmatpush1.bf16.msra.mxu0 0
    %557 = vmatprep.subr.bf16.mxu0 0
    %558 = vmatpush1.bf16.msra.mxu0 0
    %559 = vmatprep.subr.bf16.mxu0 0
    %560 = vmatpush1.bf16.msra.mxu0 0
    %561 = vmatprep.subr.bf16.mxu0 0
    %562 = vmatpush1.bf16.msra.mxu0 0
    %563 = vmatprep.subr.bf16.mxu0 0
    %564 = vmatpush1.bf16.msra.mxu0 0
    %565 = vmatprep.subr.bf16.mxu0 0
    %566 = vmatpush1.bf16.msra.mxu0 0
    %567 = vmatprep.mubr.bf16.mxu0 0
    %568 = vmatmul.mubr.bf16.gmra.mrb[0].mxu0 %v461
    %v569 = vpop.f32.mrb[0].mxu0
    %v570 = vadd.f32 %v485, %v569
    %v571 = vpop.f32.mrb[0].mxu0
    %v572 = vpop.f32.mrb[0].mxu0
    %v573 = vadd.f32 %v485, %v572
    %v574 = vpop.f32.mrb[0].mxu0
    %575 = vdwg.mxu0
    %v576 = vmax.f32 %v570, 0.0
    %v577 = vmax.f32 %v573, 0.0
    %v578 = vpack.c.bf16 %v577, %v576
    %s579 = scalar_lea.vmem [#allocation2], 256
    %v580 = vld [vmem:[%s579] sm:$0xf]
    %v581 = vld [vmem:[%s579 + $0x4] sm:$0xf]
    %v582 = vld [vmem:[%s579 + $0x8] sm:$0xf]
    %v583 = vld [vmem:[%s579 + $0xc] sm:$0xf]
    %v584 = vld [vmem:[%s579 + $0x10] sm:$0xf]
    %v585 = vld [vmem:[%s579 + $0x14] sm:$0xf]
    %v586 = vld [vmem:[%s579 + $0x18] sm:$0xf]
    %v587 = vld [vmem:[%s579 + $0x1c] sm:$0xf]
    %v588 = vld [vmem:[%s579 + $0x20] sm:$0xf]
    %v589 = vld [vmem:[%s579 + $0x24] sm:$0xf]
    %v590 = vld [vmem:[%s579 + $0x28] sm:$0xf]
    %v591 = vld [vmem:[%s579 + $0x2c] sm:$0xf]
    %v592 = vld [vmem:[%s579 + $0x30] sm:$0xf]
    %v593 = vld [vmem:[%s579 + $0x34] sm:$0xf]
    %v594 = vld [vmem:[%s579 + $0x38] sm:$0xf]
    %v595 = vld [vmem:[%s579 + $0x3c] sm:$0xf]
    %s596 = scalar_lea.vmem %s4, 4
    %v597 = vld [vmem:[%s596] sm:$0x1]
    %v599 = vlaneseq
    %v600 = vshrl.u32 %v599, 7
    %v601 = vsub.s32 0, %v600
    %v602 = vrot.slane %v597, %v601
    %v620 = vunpack.c.l.b16 %v580
    %v621 = vunpack.c.l.b16 %v581
    %v622 = vunpack.c.l.b16 %v582
    %v623 = vunpack.c.l.b16 %v583
    %v624 = vunpack.c.l.b16 %v584
    %v625 = vunpack.c.l.b16 %v585
    %v626 = vunpack.c.l.b16 %v586
    %v627 = vunpack.c.l.b16 %v587
    %v628 = vunpack.c.l.b16 %v588
    %v629 = vunpack.c.l.b16 %v589
    %v630 = vunpack.c.l.b16 %v590
    %v631 = vunpack.c.l.b16 %v591
    %v632 = vunpack.c.l.b16 %v592
    %v633 = vunpack.c.l.b16 %v593
    %v634 = vunpack.c.l.b16 %v594
    %v635 = vunpack.c.l.b16 %v595
    %v636 = vpack.c.b16 %v621, %v620
    %v637 = vpack.c.b16 %v623, %v622
    %v638 = vpack.c.b16 %v625, %v624
    %v639 = vpack.c.b16 %v627, %v626
    %v640 = vpack.c.b16 %v629, %v628
    %v641 = vpack.c.b16 %v631, %v630
    %v642 = vpack.c.b16 %v633, %v632
    %v643 = vpack.c.b16 %v635, %v634
    %652 = vmatprep.subr.bf16.mxu0 0
    %653 = vmatpush1.bf16.msra.mxu0 %v636
    %654 = vmatprep.subr.bf16.mxu0 0
    %655 = vmatpush1.bf16.msra.mxu0 %v637
    %656 = vmatprep.subr.bf16.mxu0 0
    %657 = vmatpush1.bf16.msra.mxu0 %v638
    %658 = vmatprep.subr.bf16.mxu0 0
    %659 = vmatpush1.bf16.msra.mxu0 %v639
    %660 = vmatprep.subr.bf16.mxu0 0
    %661 = vmatpush1.bf16.msra.mxu0 %v640
    %662 = vmatprep.subr.bf16.mxu0 0
    %663 = vmatpush1.bf16.msra.mxu0 %v641
    %664 = vmatprep.subr.bf16.mxu0 0
    %665 = vmatpush1.bf16.msra.mxu0 %v642
    %666 = vmatprep.subr.bf16.mxu0 0
    %667 = vmatpush1.bf16.msra.mxu0 %v643
    %668 = vmatprep.subr.bf16.mxu0 0
    %669 = vmatpush1.bf16.msra.mxu0 0
    %670 = vmatprep.subr.bf16.mxu0 0
    %671 = vmatpush1.bf16.msra.mxu0 0
    %672 = vmatprep.subr.bf16.mxu0 0
    %673 = vmatpush1.bf16.msra.mxu0 0
    %674 = vmatprep.subr.bf16.mxu0 0
    %675 = vmatpush1.bf16.msra.mxu0 0
    %676 = vmatprep.subr.bf16.mxu0 0
    %677 = vmatpush1.bf16.msra.mxu0 0
    %678 = vmatprep.subr.bf16.mxu0 0
    %679 = vmatpush1.bf16.msra.mxu0 0
    %680 = vmatprep.subr.bf16.mxu0 0
    %681 = vmatpush1.bf16.msra.mxu0 0
    %682 = vmatprep.subr.bf16.mxu0 0
    %683 = vmatpush1.bf16.msra.mxu0 0
    %684 = vmatprep.mubr.bf16.mxu0 0
    %685 = vmatmul.mubr.bf16.gmra.mrb[0].mxu0 %v578
    %v686 = vpop.f32.mrb[0].mxu0
    %v687 = vadd.f32 %v602, %v686
    %v688 = vpop.f32.mrb[0].mxu0
    %v689 = vpop.f32.mrb[0].mxu0
    %v690 = vadd.f32 %v602, %v689
    %v691 = vpop.f32.mrb[0].mxu0
    %692 = vdwg.mxu0
    %693 = vst [vmem:[%s5] sm:$0xff] %v687
    %694 = vst [vmem:[%s5 + $0x8] sm:$0xff] %v690
    // Predicated region
    $region26: #{deep_mlp_forward.1} parent=1 // pred_check
      _
    $region27: #{deep_mlp_forward.1} parent=1 // pred_check_branch
      %696 = sbr.rel (0) target = $region29
    $region28: #{deep_mlp_forward.1} parent=1 // pred_region
      _
    $region29: #{deep_mlp_forward.1} parent=1 // pred_fallthru
      _
    // Predicated region
    $region30: #{deep_mlp_forward.1} parent=1 // pred_check
      _
    $region31: #{deep_mlp_forward.1} parent=1 // pred_check_branch
      %698 = sbr.rel (0) target = $region33
    $region32: #{deep_mlp_forward.1} parent=1 // pred_region
      _
    $region33: #{deep_mlp_forward.1} parent=1 // pred_fallthru
      _
    %699 = vsyncpa [#allocation3], 1

</llo_original>
